<compile_context>
chip_gen: v5e
topology: v5e:2x2
jax: 0.10.0
libtpu: 0.0.40
codegen_flags: <defaults>
</compile_context>

<pallas_src>
import jax
import jax.numpy as jnp
from jax.experimental import pallas as pl
from jax.experimental.pallas import tpu as pltpu

_TILE_CAP = 2048                 # safe VMEM budget on v5e/v6e/v7x; may be raised to 4096 on v6e
_VMEM_LIMIT_BYTES = 48 * 1024 * 1024
_TN_DIMS = (((0,), (0,)), ((), ()))   # contract Cin of (Cin,T) with Cin of (Cin,no) -> (T,no)


def _round_up(v, m):
    return ((v + m - 1) // m) * m


def _choose_tile(S, cap=_TILE_CAP):
    """Return (tile, s_pad).

    S <= cap : single spatial tile covering exactly S (no padding, no slice).
    S  > cap : best 128-multiple tile <= cap minimizing padding; for standard
               YOLO levels (6400, 25600) an exact divisor is found (s_pad == S).
    """
    if S <= cap:
        return S, S
    best_t, best_pad = 128, (-S) % 128
    for t in range(256, cap + 1, 128):
        pad = (-S) % t
        if pad <= best_pad:                 # prefer larger tiles on ties
            best_t, best_pad = t, pad
    return best_t, S + best_pad


# ----------------------------------------------------------------------------
# Pallas kernel: fused 1x1-conv (matmul) + bias + sigmoid + YOLO box decode.
# Outputs are produced directly in (na, T, no) layout so the wrapper needs no
# transpose of the large output tensors.
# ----------------------------------------------------------------------------
def _make_detect_kernel(na, with_raw):
    def kernel(x_ref, w_ref, coef_ref, goff_ref, *out_refs):
        # x_ref:    (Cin, T)        spatial tile (lanes = spatial)
        # w_ref:    (na, Cin, no)   conv weight, anchor-major
        # coef_ref: (na, 8, no)     rows = [bias, qa, qb, mx, my, 0, 0, 0]
        # goff_ref: (T, 2)          stride*(x-0.5), stride*(y-0.5) per position
        # out refs: (na, T, no)
        if with_raw:
            raw_ref, dec_ref = out_refs
        else:
            (dec_ref,) = out_refs

        x = x_ref[...]                        # (Cin, T)
        gx = goff_ref[:, 0:1]                 # (T, 1)
        gy = goff_ref[:, 1:2]                 # (T, 1)

        # Anchor-independent coefficients: hoist the (T, no) broadcast work out
        # of the anchor loop (JAX does not CSE broadcast_in_dim).
        c0 = coef_ref[0]                      # (8, no)
        qb = c0[2:3, :]                       # 2*stride on xy rows, 1 on conf rows
        off = c0[3:4, :] * gx + c0[4:5, :] * gy   # (T, no) grid offset term

        for a in range(na):                   # static unroll, na is small (3)
            c_a = coef_ref[a]                 # (8, no)
            conv = jax.lax.dot_general(       # (T, no) = X^T @ W_a  (MXU, f32 acc)
                x, w_ref[a], _TN_DIMS,
                preferred_element_type=jnp.float32) + c_a[0:1, :]
            if with_raw:
                raw_ref[a] = conv.astype(raw_ref.dtype)

            # Sigmoid with the reciprocal on the EUP slot; one Newton refinement
            # keeps decoded boxes ~f32 accurate.  The clamp avoids inf*0 -> nan
            # for extremely negative logits.
            den = 1.0 + jnp.exp(-jnp.maximum(conv, -60.0))
            r = pl.reciprocal(den, approx=True)
            s = r * (2.0 - den * r)

            dec_ref[a] = (s * (c_a[1:2, :] * s + qb) + off).astype(dec_ref.dtype)

    return kernel


def detect_level_pallas(x3d, w_k, coef, goff, tile, *, with_raw, raw_dtype):
    """x3d: (bs, Cin, s_pad), w_k: (na, Cin, no), coef: (na, 8, no), goff: (s_pad, 2)."""
    bs, cin, s_pad = x3d.shape
    na, _, no = w_k.shape
    n_tiles = s_pad // tile

    out_shape, out_specs = [], []
    if with_raw:
        out_shape.append(jax.ShapeDtypeStruct((bs, na, s_pad, no), raw_dtype))
        out_specs.append(pl.BlockSpec((None, na, tile, no), lambda t, b: (b, 0, t, 0)))
    out_shape.append(jax.ShapeDtypeStruct((bs, na, s_pad, no), jnp.float32))
    out_specs.append(pl.BlockSpec((None, na, tile, no), lambda t, b: (b, 0, t, 0)))

    outs = pl.pallas_call(
        _make_detect_kernel(na, with_raw),
        out_shape=tuple(out_shape),
        # spatial tiles first so v7x's two TensorCores split the big axis when bs==1
        grid=(n_tiles, bs),
        in_specs=[
            pl.BlockSpec((None, cin, tile), lambda t, b: (b, 0, t)),
            pl.BlockSpec((na, cin, no), lambda t, b: (0, 0, 0)),
            pl.BlockSpec((na, 8, no), lambda t, b: (0, 0, 0)),
            pl.BlockSpec((tile, 2), lambda t, b: (t, 0)),
        ],
        out_specs=tuple(out_specs),
        compiler_params=pltpu.CompilerParams(
            dimension_semantics=("parallel", "parallel"),
            vmem_limit_bytes=_VMEM_LIMIT_BYTES),
    )(x3d, w_k, coef, goff)

    if not isinstance(outs, (tuple, list)):
        outs = (outs,)
    if with_raw:
        return outs[0], outs[1]
    return None, outs[0]


# ----------------------------------------------------------------------------
# Detect head wrapper (parameter setup; all remaining glue reshapes are views)
# ----------------------------------------------------------------------------
class DetectPallas:
    def __init__(self, nc, anchors, ch, key):
        self.nc = nc
        self.no = nc + 5
        self.nl = len(anchors)
        self.na = len(anchors[0]) // 2
        self.anchors = jnp.asarray(anchors, jnp.float32).reshape(self.nl, -1, 2)
        # stride is normally set from the model; fixed deterministically here
        self.stride_list = [8.0, 16.0, 32.0][: self.nl]
        self.stride = jnp.asarray(self.stride_list, jnp.float32)

        cout = self.no * self.na
        keys = jax.random.split(key, 2 * self.nl)
        self.w, self.b, self.w_k, self.coef = [], [], [], []
        for i, c in enumerate(ch):
            w = 0.05 * jax.random.normal(keys[2 * i], (cout, c), jnp.float32)
            b = 0.05 * jax.random.normal(keys[2 * i + 1], (cout,), jnp.float32)
            self.w.append(w)
            self.b.append(b)
            # kernel weight layout (na, Cin, no): the per-anchor matmul result is
            # (T, no) and streams straight into the (bs, na, S, no) output.
            self.w_k.append(w.reshape(self.na, self.no, c).transpose(0, 2, 1))
            self.coef.append(self._make_coef(i, b))

    def _make_coef(self, i, b):
        """(na, 8, no) decode table: rows = [bias, qa, qb, mx, my, 0, 0, 0]."""
        na, no = self.na, self.no
        stride = self.stride_list[i]
        o = jnp.arange(no)
        is_x = o == 0
        is_y = o == 1
        is_wh = (o == 2) | (o == 3)
        qb = jnp.where(is_x | is_y, 2.0 * stride, jnp.where(is_wh, 0.0, 1.0))
        qa = jnp.zeros((na, no), jnp.float32)
        qa = qa.at[:, 2].set(4.0 * stride * self.anchors[i][:, 0])
        qa = qa.at[:, 3].set(4.0 * stride * self.anchors[i][:, 1])
        coef = jnp.zeros((na, 8, no), jnp.float32)
        coef = (coef.at[:, 0, :].set(b.reshape(na, no))
                    .at[:, 1, :].set(qa)
                    .at[:, 2, :].set(jnp.broadcast_to(qb, (na, no)))
                    .at[:, 3, :].set(jnp.broadcast_to(is_x.astype(jnp.float32), (na, no)))
                    .at[:, 4, :].set(jnp.broadcast_to(is_y.astype(jnp.float32), (na, no))))
        return coef

    def _make_goff(self, i, ny, nx, s_pad):
        """(s_pad, 2) table: stride*(x-0.5) and stride*(y-0.5) per spatial index."""
        stride = self.stride_list[i]
        yv, xv = jnp.meshgrid(jnp.arange(ny, dtype=jnp.float32),
                              jnp.arange(nx, dtype=jnp.float32), indexing='ij')
        goff = jnp.stack([((xv - 0.5) * stride).reshape(-1),
                          ((yv - 0.5) * stride).reshape(-1)], axis=1)
        if s_pad != ny * nx:
            goff = jnp.pad(goff, ((0, s_pad - ny * nx), (0, 0)))
        return goff

    def __call__(self, xs, with_raw=True):
        """Inference-mode Detect.forward.

        with_raw=True  -> (cat(z, 1), x_list)  (matches the PyTorch eval return)
        with_raw=False -> (cat(z, 1),)         (export-style; halves written bytes)
        """
        z, x_out = [], []
        for i in range(self.nl):
            x = xs[i]                                   # (bs, ch, ny, nx) NCHW
            bs, c, ny, nx = x.shape
            S = ny * nx
            tile, s_pad = _choose_tile(S)

            x3d = x.reshape(bs, c, S)                   # no NHWC transpose
            if s_pad != S:
                x3d = jnp.pad(x3d, ((0, 0), (0, 0), (0, s_pad - S)))

            goff = self._make_goff(i, ny, nx, s_pad)
            # bf16 pass-through: weights follow the activation dtype (no-op for f32)
            w_k = self.w_k[i].astype(x.dtype)

            raw, dec = detect_level_pallas(x3d, w_k, self.coef[i], goff, tile,
                                           with_raw=with_raw, raw_dtype=x.dtype)
            if s_pad != S:                              # only if no exact-divisor tile exists
                dec = dec[:, :, :S, :]
                if raw is not None:
                    raw = raw[:, :, :S, :]

            # kernel already emitted (bs, na, S, no); these reshapes are views
            z.append(dec.reshape(bs, self.na * S, self.no))
            if with_raw:
                x_out.append(raw.reshape(bs, self.na, ny, nx, self.no))
        # TODO(synk): training / Segment (mask+Proto) branches are not produced;
        # only the Detect inference return is implemented.
        zc = jnp.concatenate(z, axis=1)
        return (zc, x_out) if with_raw else (zc,)


# ----------------------------------------------------------------------------
# Pure-JAX reference (mirrors the PyTorch forward) for the correctness check
# ----------------------------------------------------------------------------
def detect_reference(xs, det: DetectPallas):
    no, na = det.no, det.na
    z, x_out = [], []
    for i, x in enumerate(xs):
        w, b = det.w[i], det.b[i]
        bs, c, ny, nx = x.shape
        conv = jnp.einsum('bchw,oc->bohw', x, w,
                          precision=jax.lax.Precision.HIGHEST) + b[None, :, None, None]
        xi = conv.reshape(bs, na, no, ny, nx).transpose(0, 1, 3, 4, 2)
        x_out.append(xi)

        yv, xv = jnp.meshgrid(jnp.arange(ny, dtype=jnp.float32),
                              jnp.arange(nx, dtype=jnp.float32), indexing='ij')
        grid = jnp.stack((xv, yv), 2)[None, None] - 0.5
        anchor_grid = (det.anchors[i] * det.stride[i]).reshape(1, na, 1, 1, 2)

        s = jax.nn.sigmoid(xi)
        xy = (s[..., 0:2] * 2 + grid) * det.stride[i]
        wh = (s[..., 2:4] * 2) ** 2 * anchor_grid
        y = jnp.concatenate([xy, wh, s[..., 4:]], axis=-1)
        z.append(y.reshape(bs, na * ny * nx, no))
    return jnp.concatenate(z, 1), x_out


if __name__ == "__main__":
    key = jax.random.PRNGKey(0)
    k_in, k_par = jax.random.split(key)

    # small synthetic config: 3 classes, 3 anchors/level, 3 levels
    nc = 3
    anchors = ((10, 13, 16, 30, 33, 23),
               (30, 61, 62, 45, 59, 119),
               (116, 90, 156, 198, 373, 326))
    ch = (4, 8, 16)
    bs = 2
    spatial = ((8, 8), (4, 4), (2, 2))

    kin = jax.random.split(k_in, len(ch))
    xs = [jax.random.normal(kin[i], (bs, ch[i], spatial[i][0], spatial[i][1]),
                            jnp.float32) for i in range(len(ch))]

    det = DetectPallas(nc, anchors, ch, k_par)

    z, x_list = det(xs)
    jax.block_until_ready(z)
    for xi in x_list:
        jax.block_until_ready(xi)

    # correctness vs. plain-JAX reference (tolerances tightened from the old 1e-2;
    # the remaining slack covers the EUP approximate-reciprocal sigmoid path).
    z_ref, x_ref = detect_reference(xs, det)
    assert z.shape == z_ref.shape
    err_z = float(jnp.max(jnp.abs(z - z_ref)))
    assert jnp.allclose(z, z_ref, rtol=1e-4, atol=1e-4), f"z mismatch, max abs err {err_z}"
    for a, b in zip(x_list, x_ref):
        assert a.shape == b.shape
        err_x = float(jnp.max(jnp.abs(a - b)))
        assert jnp.allclose(a, b, rtol=1e-4, atol=1e-4), f"x mismatch, max abs err {err_x}"

    # export-style fast path (raw output skipped -> half the kernel output bytes)
    (z2,) = det(xs, with_raw=False)
    jax.block_until_ready(z2)
    assert jnp.allclose(z2, z, rtol=1e-5, atol=1e-5)

    print("KERNEL_OK")
</pallas_src>

<mosaic_0001>
module attributes {stable_mosaic.version = 11 : i64} {
  func.func @kernel(%arg0: i32, %arg1: i32, %arg2: memref<1x4x64xf32, #tpu.memory_space<vmem>>, %arg3: memref<3x4x8xf32, #tpu.memory_space<vmem>>, %arg4: memref<3x8x8xf32, #tpu.memory_space<vmem>>, %arg5: memref<64x2xf32, #tpu.memory_space<vmem>>, %arg6: memref<1x3x64x8xf32, #tpu.memory_space<vmem>>, %arg7: memref<1x3x64x8xf32, #tpu.memory_space<vmem>>) attributes {dimension_semantics = [#tpu.dimension_semantics<parallel>, #tpu.dimension_semantics<parallel>], iteration_bounds = array<i64: 1, 2>, scalar_prefetch = 0 : i64, scratch_operands = 0 : i64, tpu.core_type = #tpu.core_type<tc>, window_params = [{transform_indices = @transform_0, window_bounds = array<i64: 1, 4, 64>}, {pipeline_mode = #tpu.pipeline_mode<synchronous>, transform_indices = @transform_1, window_bounds = array<i64: 3, 4, 8>}, {pipeline_mode = #tpu.pipeline_mode<synchronous>, transform_indices = @transform_2, window_bounds = array<i64: 3, 8, 8>}, {transform_indices = @transform_3, window_bounds = array<i64: 64, 2>}, {transform_indices = @transform_4, window_bounds = array<i64: 1, 3, 64, 8>}, {transform_indices = @transform_5, window_bounds = array<i64: 1, 3, 64, 8>}]} {
    %c0 = arith.constant 0 : index
    %c0_0 = arith.constant 0 : index
    %c0_1 = arith.constant 0 : index
    %0 = vector.load %arg2[%c0, %c0_0, %c0_1] : memref<1x4x64xf32, #tpu.memory_space<vmem>>, vector<1x4x64xf32>
    %1 = vector.shape_cast %0 : vector<1x4x64xf32> to vector<4x64xf32>
    %c0_2 = arith.constant 0 : index
    %c0_3 = arith.constant 0 : index
    %2 = vector.load %arg5[%c0_2, %c0_3] : memref<64x2xf32, #tpu.memory_space<vmem>>, vector<64x1xf32>
    %c0_4 = arith.constant 0 : index
    %c1 = arith.constant 1 : index
    %3 = vector.load %arg5[%c0_4, %c1] : memref<64x2xf32, #tpu.memory_space<vmem>>, vector<64x1xf32>
    %c0_5 = arith.constant 0 : index
    %c0_6 = arith.constant 0 : index
    %c0_7 = arith.constant 0 : index
    %4 = vector.load %arg4[%c0_5, %c0_6, %c0_7] : memref<3x8x8xf32, #tpu.memory_space<vmem>>, vector<1x8x8xf32>
    %5 = vector.shape_cast %4 : vector<1x8x8xf32> to vector<8x8xf32>
    %6 = vector.extract_strided_slice %5 {offsets = [2, 0], sizes = [1, 8], strides = [1, 1]} : vector<8x8xf32> to vector<1x8xf32>
    %7 = vector.extract_strided_slice %5 {offsets = [3, 0], sizes = [1, 8], strides = [1, 1]} : vector<8x8xf32> to vector<1x8xf32>
    %8 = vector.broadcast %7 : vector<1x8xf32> to vector<64x8xf32>
    %9 = vector.broadcast %2 : vector<64x1xf32> to vector<64x8xf32>
    %10 = arith.mulf %8, %9 : vector<64x8xf32>
    %11 = vector.extract_strided_slice %5 {offsets = [4, 0], sizes = [1, 8], strides = [1, 1]} : vector<8x8xf32> to vector<1x8xf32>
    %12 = vector.broadcast %11 : vector<1x8xf32> to vector<64x8xf32>
    %13 = vector.broadcast %3 : vector<64x1xf32> to vector<64x8xf32>
    %14 = arith.mulf %12, %13 : vector<64x8xf32>
    %15 = arith.addf %10, %14 : vector<64x8xf32>
    %c0_8 = arith.constant 0 : index
    %c0_9 = arith.constant 0 : index
    %c0_10 = arith.constant 0 : index
    %16 = vector.load %arg4[%c0_8, %c0_9, %c0_10] : memref<3x8x8xf32, #tpu.memory_space<vmem>>, vector<1x8x8xf32>
    %17 = vector.shape_cast %16 : vector<1x8x8xf32> to vector<8x8xf32>
    %c0_11 = arith.constant 0 : index
    %c0_12 = arith.constant 0 : index
    %c0_13 = arith.constant 0 : index
    %18 = vector.load %arg3[%c0_11, %c0_12, %c0_13] : memref<3x4x8xf32, #tpu.memory_space<vmem>>, vector<1x4x8xf32>
    %19 = vector.shape_cast %18 : vector<1x4x8xf32> to vector<4x8xf32>
    %cst = arith.constant dense<0.000000e+00> : vector<64x8xf32>
    %20 = tpu.matmul %1, %19, %cst {dimension_numbers = #tpu.dot_dimension_numbers<[0], [0], [1], [1], [0, 1, 1, 1], [], []>} : vector<4x64xf32>, vector<4x8xf32>, vector<64x8xf32> -> vector<64x8xf32>
    %21 = vector.extract_strided_slice %17 {offsets = [0, 0], sizes = [1, 8], strides = [1, 1]} : vector<8x8xf32> to vector<1x8xf32>
    %22 = vector.broadcast %21 : vector<1x8xf32> to vector<64x8xf32>
    %23 = arith.addf %20, %22 : vector<64x8xf32>
    %c0_14 = arith.constant 0 : index
    %c0_15 = arith.constant 0 : index
    %c0_16 = arith.constant 0 : index
    %c0_17 = arith.constant 0 : index
    %24 = vector.load %arg6[%c0_14, %c0_15, %c0_16, %c0_17] : memref<1x3x64x8xf32, #tpu.memory_space<vmem>>, vector<1x1x64x8xf32>
    %25 = vector.shape_cast %24 : vector<1x1x64x8xf32> to vector<64x8xf32>
    %26 = vector.shape_cast %23 : vector<64x8xf32> to vector<1x1x64x8xf32>
    tpu.vector_store %arg6[%c0_14, %c0_15, %c0_16, %c0_17], %26 {strides = array<i32>} : memref<1x3x64x8xf32, #tpu.memory_space<vmem>>, vector<1x1x64x8xf32>,
    %cst_18 = arith.constant -6.000000e+01 : f32
    %27 = vector.broadcast %cst_18 : f32 to vector<64x8xf32>
    %28 = arith.maximumf %23, %27 : vector<64x8xf32>
    %cst_19 = arith.constant 0.000000e+00 : f32
    %29 = vector.broadcast %cst_19 : f32 to vector<64x8xf32>
    %30 = arith.subf %29, %28 : vector<64x8xf32>
    %31 = math.exp %30 : vector<64x8xf32>
    %cst_20 = arith.constant 1.000000e+00 : f32
    %32 = vector.broadcast %cst_20 : f32 to vector<64x8xf32>
    %33 = arith.addf %32, %31 : vector<64x8xf32>
    %34 = tpu.reciprocal %33 {approx = true} : vector<64x8xf32> -> vector<64x8xf32>
    %35 = arith.mulf %33, %34 : vector<64x8xf32>
    %cst_21 = arith.constant 2.000000e+00 : f32
    %36 = vector.broadcast %cst_21 : f32 to vector<64x8xf32>
    %37 = arith.subf %36, %35 : vector<64x8xf32>
    %38 = arith.mulf %34, %37 : vector<64x8xf32>
    %39 = vector.extract_strided_slice %17 {offsets = [1, 0], sizes = [1, 8], strides = [1, 1]} : vector<8x8xf32> to vector<1x8xf32>
    %40 = vector.broadcast %39 : vector<1x8xf32> to vector<64x8xf32>
    %41 = arith.mulf %40, %38 : vector<64x8xf32>
    %42 = vector.broadcast %6 : vector<1x8xf32> to vector<64x8xf32>
    %43 = arith.addf %41, %42 : vector<64x8xf32>
    %44 = arith.mulf %38, %43 : vector<64x8xf32>
    %45 = arith.addf %44, %15 : vector<64x8xf32>
    %c0_22 = arith.constant 0 : index
    %c0_23 = arith.constant 0 : index
    %c0_24 = arith.constant 0 : index
    %c0_25 = arith.constant 0 : index
    %46 = vector.load %arg7[%c0_22, %c0_23, %c0_24, %c0_25] : memref<1x3x64x8xf32, #tpu.memory_space<vmem>>, vector<1x1x64x8xf32>
    %47 = vector.shape_cast %46 : vector<1x1x64x8xf32> to vector<64x8xf32>
    %48 = vector.shape_cast %45 : vector<64x8xf32> to vector<1x1x64x8xf32>
    tpu.vector_store %arg7[%c0_22, %c0_23, %c0_24, %c0_25], %48 {strides = array<i32>} : memref<1x3x64x8xf32, #tpu.memory_space<vmem>>, vector<1x1x64x8xf32>,
    %c1_26 = arith.constant 1 : index
    %c0_27 = arith.constant 0 : index
    %c0_28 = arith.constant 0 : index
    %49 = vector.load %arg4[%c1_26, %c0_27, %c0_28] : memref<3x8x8xf32, #tpu.memory_space<vmem>>, vector<1x8x8xf32>
    %50 = vector.shape_cast %49 : vector<1x8x8xf32> to vector<8x8xf32>
    %c1_29 = arith.constant 1 : index
    %c0_30 = arith.constant 0 : index
    %c0_31 = arith.constant 0 : index
    %51 = vector.load %arg3[%c1_29, %c0_30, %c0_31] : memref<3x4x8xf32, #tpu.memory_space<vmem>>, vector<1x4x8xf32>
    %52 = vector.shape_cast %51 : vector<1x4x8xf32> to vector<4x8xf32>
    %cst_32 = arith.constant dense<0.000000e+00> : vector<64x8xf32>
    %53 = tpu.matmul %1, %52, %cst_32 {dimension_numbers = #tpu.dot_dimension_numbers<[0], [0], [1], [1], [0, 1, 1, 1], [], []>} : vector<4x64xf32>, vector<4x8xf32>, vector<64x8xf32> -> vector<64x8xf32>
    %54 = vector.extract_strided_slice %50 {offsets = [0, 0], sizes = [1, 8], strides = [1, 1]} : vector<8x8xf32> to vector<1x8xf32>
    %55 = vector.broadcast %54 : vector<1x8xf32> to vector<64x8xf32>
    %56 = arith.addf %53, %55 : vector<64x8xf32>
    %c0_33 = arith.constant 0 : index
    %c1_34 = arith.constant 1 : index
    %c0_35 = arith.constant 0 : index
    %c0_36 = arith.constant 0 : index
    %57 = vector.load %arg6[%c0_33, %c1_34, %c0_35, %c0_36] : memref<1x3x64x8xf32, #tpu.memory_space<vmem>>, vector<1x1x64x8xf32>
    %58 = vector.shape_cast %57 : vector<1x1x64x8xf32> to vector<64x8xf32>
    %59 = vector.shape_cast %56 : vector<64x8xf32> to vector<1x1x64x8xf32>
    tpu.vector_store %arg6[%c0_33, %c1_34, %c0_35, %c0_36], %59 {strides = array<i32>} : memref<1x3x64x8xf32, #tpu.memory_space<vmem>>, vector<1x1x64x8xf32>,
    %cst_37 = arith.constant -6.000000e+01 : f32
    %60 = vector.broadcast %cst_37 : f32 to vector<64x8xf32>
    %61 = arith.maximumf %56, %60 : vector<64x8xf32>
    %cst_38 = arith.constant 0.000000e+00 : f32
    %62 = vector.broadcast %cst_38 : f32 to vector<64x8xf32>
    %63 = arith.subf %62, %61 : vector<64x8xf32>
    %64 = math.exp %63 : vector<64x8xf32>
    %cst_39 = arith.constant 1.000000e+00 : f32
    %65 = vector.broadcast %cst_39 : f32 to vector<64x8xf32>
    %66 = arith.addf %65, %64 : vector<64x8xf32>
    %67 = tpu.reciprocal %66 {approx = true} : vector<64x8xf32> -> vector<64x8xf32>
    %68 = arith.mulf %66, %67 : vector<64x8xf32>
    %cst_40 = arith.constant 2.000000e+00 : f32
    %69 = vector.broadcast %cst_40 : f32 to vector<64x8xf32>
    %70 = arith.subf %69, %68 : vector<64x8xf32>
    %71 = arith.mulf %67, %70 : vector<64x8xf32>
    %72 = vector.extract_strided_slice %50 {offsets = [1, 0], sizes = [1, 8], strides = [1, 1]} : vector<8x8xf32> to vector<1x8xf32>
    %73 = vector.broadcast %72 : vector<1x8xf32> to vector<64x8xf32>
    %74 = arith.mulf %73, %71 : vector<64x8xf32>
    %75 = vector.broadcast %6 : vector<1x8xf32> to vector<64x8xf32>
    %76 = arith.addf %74, %75 : vector<64x8xf32>
    %77 = arith.mulf %71, %76 : vector<64x8xf32>
    %78 = arith.addf %77, %15 : vector<64x8xf32>
    %c0_41 = arith.constant 0 : index
    %c1_42 = arith.constant 1 : index
    %c0_43 = arith.constant 0 : index
    %c0_44 = arith.constant 0 : index
    %79 = vector.load %arg7[%c0_41, %c1_42, %c0_43, %c0_44] : memref<1x3x64x8xf32, #tpu.memory_space<vmem>>, vector<1x1x64x8xf32>
    %80 = vector.shape_cast %79 : vector<1x1x64x8xf32> to vector<64x8xf32>
    %81 = vector.shape_cast %78 : vector<64x8xf32> to vector<1x1x64x8xf32>
    tpu.vector_store %arg7[%c0_41, %c1_42, %c0_43, %c0_44], %81 {strides = array<i32>} : memref<1x3x64x8xf32, #tpu.memory_space<vmem>>, vector<1x1x64x8xf32>,
    %c2 = arith.constant 2 : index
    %c0_45 = arith.constant 0 : index
    %c0_46 = arith.constant 0 : index
    %82 = vector.load %arg4[%c2, %c0_45, %c0_46] : memref<3x8x8xf32, #tpu.memory_space<vmem>>, vector<1x8x8xf32>
    %83 = vector.shape_cast %82 : vector<1x8x8xf32> to vector<8x8xf32>
    %c2_47 = arith.constant 2 : index
    %c0_48 = arith.constant 0 : index
    %c0_49 = arith.constant 0 : index
    %84 = vector.load %arg3[%c2_47, %c0_48, %c0_49] : memref<3x4x8xf32, #tpu.memory_space<vmem>>, vector<1x4x8xf32>
    %85 = vector.shape_cast %84 : vector<1x4x8xf32> to vector<4x8xf32>
    %cst_50 = arith.constant dense<0.000000e+00> : vector<64x8xf32>
    %86 = tpu.matmul %1, %85, %cst_50 {dimension_numbers = #tpu.dot_dimension_numbers<[0], [0], [1], [1], [0, 1, 1, 1], [], []>} : vector<4x64xf32>, vector<4x8xf32>, vector<64x8xf32> -> vector<64x8xf32>
    %87 = vector.extract_strided_slice %83 {offsets = [0, 0], sizes = [1, 8], strides = [1, 1]} : vector<8x8xf32> to vector<1x8xf32>
    %88 = vector.broadcast %87 : vector<1x8xf32> to vector<64x8xf32>
    %89 = arith.addf %86, %88 : vector<64x8xf32>
    %c0_51 = arith.constant 0 : index
    %c2_52 = arith.constant 2 : index
    %c0_53 = arith.constant 0 : index
    %c0_54 = arith.constant 0 : index
    %90 = vector.load %arg6[%c0_51, %c2_52, %c0_53, %c0_54] : memref<1x3x64x8xf32, #tpu.memory_space<vmem>>, vector<1x1x64x8xf32>
    %91 = vector.shape_cast %90 : vector<1x1x64x8xf32> to vector<64x8xf32>
    %92 = vector.shape_cast %89 : vector<64x8xf32> to vector<1x1x64x8xf32>
    tpu.vector_store %arg6[%c0_51, %c2_52, %c0_53, %c0_54], %92 {strides = array<i32>} : memref<1x3x64x8xf32, #tpu.memory_space<vmem>>, vector<1x1x64x8xf32>,
    %cst_55 = arith.constant -6.000000e+01 : f32
    %93 = vector.broadcast %cst_55 : f32 to vector<64x8xf32>
    %94 = arith.maximumf %89, %93 : vector<64x8xf32>
    %cst_56 = arith.constant 0.000000e+00 : f32
    %95 = vector.broadcast %cst_56 : f32 to vector<64x8xf32>
    %96 = arith.subf %95, %94 : vector<64x8xf32>
    %97 = math.exp %96 : vector<64x8xf32>
    %cst_57 = arith.constant 1.000000e+00 : f32
    %98 = vector.broadcast %cst_57 : f32 to vector<64x8xf32>
    %99 = arith.addf %98, %97 : vector<64x8xf32>
    %100 = tpu.reciprocal %99 {approx = true} : vector<64x8xf32> -> vector<64x8xf32>
    %101 = arith.mulf %99, %100 : vector<64x8xf32>
    %cst_58 = arith.constant 2.000000e+00 : f32
    %102 = vector.broadcast %cst_58 : f32 to vector<64x8xf32>
    %103 = arith.subf %102, %101 : vector<64x8xf32>
    %104 = arith.mulf %100, %103 : vector<64x8xf32>
    %105 = vector.extract_strided_slice %83 {offsets = [1, 0], sizes = [1, 8], strides = [1, 1]} : vector<8x8xf32> to vector<1x8xf32>
    %106 = vector.broadcast %105 : vector<1x8xf32> to vector<64x8xf32>
    %107 = arith.mulf %106, %104 : vector<64x8xf32>
    %108 = vector.broadcast %6 : vector<1x8xf32> to vector<64x8xf32>
    %109 = arith.addf %107, %108 : vector<64x8xf32>
    %110 = arith.mulf %104, %109 : vector<64x8xf32>
    %111 = arith.addf %110, %15 : vector<64x8xf32>
    %c0_59 = arith.constant 0 : index
    %c2_60 = arith.constant 2 : index
    %c0_61 = arith.constant 0 : index
    %c0_62 = arith.constant 0 : index
    %112 = vector.load %arg7[%c0_59, %c2_60, %c0_61, %c0_62] : memref<1x3x64x8xf32, #tpu.memory_space<vmem>>, vector<1x1x64x8xf32>
    %113 = vector.shape_cast %112 : vector<1x1x64x8xf32> to vector<64x8xf32>
    %114 = vector.shape_cast %111 : vector<64x8xf32> to vector<1x1x64x8xf32>
    tpu.vector_store %arg7[%c0_59, %c2_60, %c0_61, %c0_62], %114 {strides = array<i32>} : memref<1x3x64x8xf32, #tpu.memory_space<vmem>>, vector<1x1x64x8xf32>,
    return
  }
  func.func @transform_0(%arg0: i32, %arg1: i32) -> (i32, i32, i32) {
    %c0_i32 = arith.constant 0 : i32
    %c0_i32_0 = arith.constant 0 : i32
    return %arg1, %c0_i32, %arg0 : i32, i32, i32
  }
  func.func @transform_1(%arg0: i32, %arg1: i32) -> (i32, i32, i32) {
    %c0_i32 = arith.constant 0 : i32
    %c0_i32_0 = arith.constant 0 : i32
    %c0_i32_1 = arith.constant 0 : i32
    %c0_i32_2 = arith.constant 0 : i32
    return %c0_i32, %c0_i32_0, %c0_i32_1 : i32, i32, i32
  }
  func.func @transform_2(%arg0: i32, %arg1: i32) -> (i32, i32, i32) {
    %c0_i32 = arith.constant 0 : i32
    %c0_i32_0 = arith.constant 0 : i32
    %c0_i32_1 = arith.constant 0 : i32
    %c0_i32_2 = arith.constant 0 : i32
    return %c0_i32, %c0_i32_0, %c0_i32_1 : i32, i32, i32
  }
  func.func @transform_3(%arg0: i32, %arg1: i32) -> (i32, i32) {
    %c0_i32 = arith.constant 0 : i32
    %c0_i32_0 = arith.constant 0 : i32
    return %arg0, %c0_i32 : i32, i32
  }
  func.func @transform_4(%arg0: i32, %arg1: i32) -> (i32, i32, i32, i32) {
    %c0_i32 = arith.constant 0 : i32
    %c0_i32_0 = arith.constant 0 : i32
    %c0_i32_1 = arith.constant 0 : i32
    return %arg1, %c0_i32, %arg0, %c0_i32_0 : i32, i32, i32, i32
  }
  func.func @transform_5(%arg0: i32, %arg1: i32) -> (i32, i32, i32, i32) {
    %c0_i32 = arith.constant 0 : i32
    %c0_i32_0 = arith.constant 0 : i32
    %c0_i32_1 = arith.constant 0 : i32
    return %arg1, %c0_i32, %arg0, %c0_i32_0 : i32, i32, i32, i32
  }
}

</mosaic_0001>

<llo_original>
// kernel: tpu_custom_call.1
$region0: #{tpu_custom_call.1}
  #allocation0 [shape = 'u32[]', space=smem, size = 0x4, offset = 0x4, fixed_abs, tag = 'smem constant byte address 0x4 - core index']
  #allocation1 [shape = 'u32[72,128]{1,0:T(1,128)}', space=vmem, size = 0x9000, scoped, tag = 'internal scratch']
  %s0 = inlined_call_operand.vmem [shape: f32[2,4,64], index: 0, kind: input, shape index: {}]
  %s1 = inlined_call_operand.vmem [shape: f32[3,4,8], index: 1, kind: input, shape index: {}]
  %s2 = inlined_call_operand.vmem [shape: f32[3,8,8], index: 2, kind: input, shape index: {}]
  %s3 = inlined_call_operand.vmem [shape: f32[64,2], index: 3, kind: input, shape index: {}]
  %s4 = inlined_call_operand.vmem [shape: f32[2,3,64,8], index: 4, kind: output, shape index: {0}]
  %s5 = inlined_call_operand.vmem [shape: f32[2,3,64,8], index: 5, kind: output, shape index: {1}]
  %6 = xla_tuple %s4, %s5
  %s7 = sld [smem:[#allocation0]]
  $region57: #{tpu_custom_call.1} parent=0
    _
  %s9 = ssub.s32 1, %s7
  %s10 = scalar_select 0, %s9, %s7
  loop: start=0, step=1, limit=4
  $region2: #{tpu_custom_call.1} parent=0 // loop_pre_header
    _
  $region3: #{tpu_custom_call.1} parent=0 // loop_header
    %s12 = sphi 0, %s16
    %p13 = scmp.ge.s32.totalorder %s12, 4
    %s19 = sphi 0, %s31
    %s20 = sphi 0, %s27
    %s21 = sphi 0, %s19
    %s22 = sphi 0, %s20
    %s23 = sphi 0, %s21
    %s24 = sphi 0, %s22
    %s36 = sphi 0, %s38
    %s39 = sphi 0, %s36
    %s40 = sphi 0, %s39
    %s56 = sphi 0, %s40
    %s60 = sphi 0, %s60
    %s62 = sphi 0, %s60
    %s63 = sphi 0, %s62
    %s77 = sphi 0, %s63
    %s81 = sphi 0, %s81
    %s83 = sphi 0, %s81
    %s84 = sphi 0, %s83
    %s98 = sphi 0, %s84
    %s104 = sphi 0, %s106
    %s107 = sphi 0, %s104
    %s108 = sphi 0, %s107
    %s124 = sphi 0, %s108
    %s132 = sphi 0, %s134
    %s135 = sphi 0, %s132
    %s136 = sphi 0, %s135
    %s152 = sphi 0, %s136
    %s160 = sphi 0, %s162
    %s163 = sphi 0, %s160
    %s164 = sphi 0, %s163
    %s180 = sphi 0, %s164
  $region4: #{tpu_custom_call.1} parent=0 // loop_header_branch
    %15 = sbr.rel (%p13) target = $region8
  $region5: #{tpu_custom_call.1} parent=0 // loop_body
    %s17 = ssub.s32 %s12, 1
    %s18 = ssub.s32 %s12, 2
    %s25 = sadd.s32 1, %s20
    %p26 = scmp.ge.s32.totalorder %s25, 2
    %s27 = scalar_select %p26, 0, %s25
    %s28 = sadd.s32 1, %s19
    %s29 = scalar_select %p26, %s28, %s19
    %p30 = scmp.ge.s32.totalorder %s29, 1
    %s31 = scalar_select %p30, 0, %s29
    %s32 = ssub.s32 %s20, %s27
    %s33 = ssub.s32 %s19, %s31
    %s34 = sor.u32 %s32, %s33
    %p35 = scmp.eq.s32.totalorder %s34, 0
    %s37 = sadd.s32 %s36, 1
    %s38 = scalar_select %p35, %s36, %s37
    %p41 = pneg %p35
    %p42 = scmp.eq.s32.totalorder %s12, 1
    %p43 = por %p41, %p42
    %p44 = scmp.ne.s32.totalorder %s36, %s39
    %p45 = scmp.eq.s32.totalorder %s12, 0
    %p46 = por %p44, %p45
    %p47 = scmp.ne.s32.totalorder %s36, %s39
    %p48 = scmp.eq.s32.totalorder %s17, 1
    %p49 = por %p47, %p48
    %p50 = scmp.ne.s32.totalorder %s39, %s40
    %p51 = scmp.eq.s32.totalorder %s17, 0
    %p52 = por %p50, %p51
    %p53 = scmp.ne.s32.totalorder %s39, %s40
    %p54 = scmp.eq.s32.totalorder %s18, 1
    %p55 = por %p53, %p54
    %p57 = scmp.ne.s32.totalorder %s40, %s56
    %p58 = scmp.eq.s32.totalorder %s18, 0
    %p59 = por %p57, %p58
    %s61 = sadd.s32 %s60, 1
    %p64 = scmp.eq.s32.totalorder %s12, 1
    %p65 = scmp.ne.s32.totalorder %s60, %s62
    %p66 = scmp.eq.s32.totalorder %s12, 0
    %p67 = por %p65, %p66
    %p68 = scmp.ne.s32.totalorder %s60, %s62
    %p69 = scmp.eq.s32.totalorder %s17, 1
    %p70 = por %p68, %p69
    %p71 = scmp.ne.s32.totalorder %s62, %s63
    %p72 = scmp.eq.s32.totalorder %s17, 0
    %p73 = por %p71, %p72
    %p74 = scmp.ne.s32.totalorder %s62, %s63
    %p75 = scmp.eq.s32.totalorder %s18, 1
    %p76 = por %p74, %p75
    %p78 = scmp.ne.s32.totalorder %s63, %s77
    %p79 = scmp.eq.s32.totalorder %s18, 0
    %p80 = por %p78, %p79
    %s82 = sadd.s32 %s81, 1
    %p85 = scmp.eq.s32.totalorder %s12, 1
    %p86 = scmp.ne.s32.totalorder %s81, %s83
    %p87 = scmp.eq.s32.totalorder %s12, 0
    %p88 = por %p86, %p87
    %p89 = scmp.ne.s32.totalorder %s81, %s83
    %p90 = scmp.eq.s32.totalorder %s17, 1
    %p91 = por %p89, %p90
    %p92 = scmp.ne.s32.totalorder %s83, %s84
    %p93 = scmp.eq.s32.totalorder %s17, 0
    %p94 = por %p92, %p93
    %p95 = scmp.ne.s32.totalorder %s83, %s84
    %p96 = scmp.eq.s32.totalorder %s18, 1
    %p97 = por %p95, %p96
    %p99 = scmp.ne.s32.totalorder %s84, %s98
    %p100 = scmp.eq.s32.totalorder %s18, 0
    %p101 = por %p99, %p100
    %s102 = ssub.s32 %s19, %s31
    %p103 = scmp.eq.s32.totalorder %s102, 0
    %s105 = sadd.s32 %s104, 1
    %s106 = scalar_select %p103, %s104, %s105
    %p109 = pneg %p103
    %p110 = scmp.eq.s32.totalorder %s12, 1
    %p111 = por %p109, %p110
    %p112 = scmp.ne.s32.totalorder %s104, %s107
    %p113 = scmp.eq.s32.totalorder %s12, 0
    %p114 = por %p112, %p113
    %p115 = scmp.ne.s32.totalorder %s104, %s107
    %p116 = scmp.eq.s32.totalorder %s17, 1
    %p117 = por %p115, %p116
    %p118 = scmp.ne.s32.totalorder %s107, %s108
    %p119 = scmp.eq.s32.totalorder %s17, 0
    %p120 = por %p118, %p119
    %p121 = scmp.ne.s32.totalorder %s107, %s108
    %p122 = scmp.eq.s32.totalorder %s18, 1
    %p123 = por %p121, %p122
    %p125 = scmp.ne.s32.totalorder %s108, %s124
    %p126 = scmp.eq.s32.totalorder %s18, 0
    %p127 = por %p125, %p126
    %s128 = ssub.s32 %s20, %s27
    %s129 = ssub.s32 %s19, %s31
    %s130 = sor.u32 %s128, %s129
    %p131 = scmp.eq.s32.totalorder %s130, 0
    %s133 = sadd.s32 %s132, 1
    %s134 = scalar_select %p131, %s132, %s133
    %p137 = pneg %p131
    %p138 = scmp.eq.s32.totalorder %s12, 1
    %p139 = por %p137, %p138
    %p140 = scmp.ne.s32.totalorder %s132, %s135
    %p141 = scmp.eq.s32.totalorder %s12, 0
    %p142 = por %p140, %p141
    %p143 = scmp.ne.s32.totalorder %s132, %s135
    %p144 = scmp.eq.s32.totalorder %s17, 1
    %p145 = por %p143, %p144
    %p146 = scmp.ne.s32.totalorder %s135, %s136
    %p147 = scmp.eq.s32.totalorder %s17, 0
    %p148 = por %p146, %p147
    %p149 = scmp.ne.s32.totalorder %s135, %s136
    %p150 = scmp.eq.s32.totalorder %s18, 1
    %p151 = por %p149, %p150
    %p153 = scmp.ne.s32.totalorder %s136, %s152
    %p154 = scmp.eq.s32.totalorder %s18, 0
    %p155 = por %p153, %p154
    %s156 = ssub.s32 %s20, %s27
    %s157 = ssub.s32 %s19, %s31
    %s158 = sor.u32 %s156, %s157
    %p159 = scmp.eq.s32.totalorder %s158, 0
    %s161 = sadd.s32 %s160, 1
    %s162 = scalar_select %p159, %s160, %s161
    %p165 = pneg %p159
    %p166 = scmp.eq.s32.totalorder %s12, 1
    %p167 = por %p165, %p166
    %p168 = scmp.ne.s32.totalorder %s160, %s163
    %p169 = scmp.eq.s32.totalorder %s12, 0
    %p170 = por %p168, %p169
    %p171 = scmp.ne.s32.totalorder %s160, %s163
    %p172 = scmp.eq.s32.totalorder %s17, 1
    %p173 = por %p171, %p172
    %p174 = scmp.ne.s32.totalorder %s163, %s164
    %p175 = scmp.eq.s32.totalorder %s17, 0
    %p176 = por %p174, %p175
    %p177 = scmp.ne.s32.totalorder %s163, %s164
    %p178 = scmp.eq.s32.totalorder %s18, 1
    %p179 = por %p177, %p178
    %p181 = scmp.ne.s32.totalorder %s164, %s180
    %p182 = scmp.eq.s32.totalorder %s18, 0
    %p183 = por %p181, %p182
    %p184 = scmp.le.s32.totalorder 1, %s12
    %p185 = scmp.lt.s32.totalorder %s12, 3
    %p186 = pnand %p184, %p185
    %p187 = pneg %p186
    // Predicated region
    $region9: #{tpu_custom_call.1} parent=5 // pred_check
      _
    $region10: #{tpu_custom_call.1} parent=5 // pred_check_branch
      %189 = sbr.rel (%p186) target = $region12
    $region11: #{tpu_custom_call.1} parent=5 // pred_region
      %s190 = ssub.s32 %s12, 1
      // Predicated region
      $region13: #{tpu_custom_call.1} parent=11 // pred_check
        %p191 = pneg %p73
      $region14: #{tpu_custom_call.1} parent=11 // pred_check_branch
        %193 = sbr.rel (%p191) target = $region16
      $region15: #{tpu_custom_call.1} parent=11 // pred_region
        _
      $region16: #{tpu_custom_call.1} parent=11 // pred_fallthru
        _
      // Predicated region
      $region17: #{tpu_custom_call.1} parent=11 // pred_check
        %p194 = pneg %p94
      $region18: #{tpu_custom_call.1} parent=11 // pred_check_branch
        %196 = sbr.rel (%p194) target = $region20
      $region19: #{tpu_custom_call.1} parent=11 // pred_region
        _
      $region20: #{tpu_custom_call.1} parent=11 // pred_fallthru
        _
      // Predicated region
      $region21: #{tpu_custom_call.1} parent=11 // pred_check
        %p197 = pneg %p120
      $region22: #{tpu_custom_call.1} parent=11 // pred_check_branch
        %199 = sbr.rel (%p197) target = $region24
      $region23: #{tpu_custom_call.1} parent=11 // pred_region
        %s200 = smul.u32 8, %s21
        %p201 = scmp.lt.s32.totalorder %s200, 7
        %s202 = scalar_select %p201, %s200, 7
        %s203 = smul.addr %s202, 8
        %s204 = scalar_lea.vmem %s3, %s203
        %s205 = smul.u32 8, %s21
      $region24: #{tpu_custom_call.1} parent=11 // pred_fallthru
        _
    $region12: #{tpu_custom_call.1} parent=5 // pred_fallthru
      _
    %p206 = scmp.lt.s32.totalorder %s12, 2
    // Predicated region
    $region25: #{tpu_custom_call.1} parent=5 // pred_check
      %p207 = pneg %p206
    $region26: #{tpu_custom_call.1} parent=5 // pred_check_branch
      %209 = sbr.rel (%p207) target = $region28
    $region27: #{tpu_custom_call.1} parent=5 // pred_region
      // Predicated region
      $region29: #{tpu_custom_call.1} parent=27 // pred_check
        %p210 = pneg %p46
      $region30: #{tpu_custom_call.1} parent=27 // pred_check_branch
        %212 = sbr.rel (%p210) target = $region32
      $region31: #{tpu_custom_call.1} parent=27 // pred_region
        %p213 = scmp.lt.s32.totalorder %s20, 1
        %s214 = scalar_select %p213, %s20, 1
        %p215 = scmp.lt.s32.totalorder %s19, 0
        %s216 = scalar_select %p215, %s19, 0
        %s217 = sadd.s32 %s216, %s214
        %s218 = smul.addr %s217, 4
        %s219 = scalar_lea.vmem %s0, %s218
      $region32: #{tpu_custom_call.1} parent=27 // pred_fallthru
        _
    $region28: #{tpu_custom_call.1} parent=5 // pred_fallthru
      _
    %p220 = scmp.le.s32.totalorder 1, %s12
    %p221 = scmp.lt.s32.totalorder %s12, 3
    %p222 = pnand %p220, %p221
    %p223 = pneg %p222
    // Predicated region
    $region33: #{tpu_custom_call.1} parent=5 // pred_check
      _
    $region34: #{tpu_custom_call.1} parent=5 // pred_check_branch
      %225 = sbr.rel (%p222) target = $region36
    $region35: #{tpu_custom_call.1} parent=5 // pred_region
      %s226 = ssub.s32 %s12, 1
      %p227 = scmp.lt.s32.totalorder %s22, 1
      %s228 = scalar_select %p227, %s22, 1
      %p229 = scmp.lt.s32.totalorder %s21, 0
      %s230 = scalar_select %p229, %s21, 0
      %s231 = sadd.s32 %s230, %s228
      %s232 = smul.addr %s231, 4
      %s233 = scalar_lea.vmem %s0, %s232
      %p234 = pneg %p52
      %p235 = pneg %p49
      %p236 = pneg %p73
      %p237 = pneg %p70
      %p238 = pneg %p94
      %p239 = pneg %p91
      %s240 = smul.u32 8, %s21
      %p241 = scmp.lt.s32.totalorder %s240, 7
      %s242 = scalar_select %p241, %s240, 7
      %s243 = smul.addr %s242, 8
      %s244 = scalar_lea.vmem %s3, %s243
      %p245 = pneg %p120
      %p246 = pneg %p117
      %p247 = pneg %p148
      %p248 = pneg %p145
      %s249 = smul.u32 8, %s21
      %p250 = scmp.lt.s32.totalorder %s22, 1
      %s251 = scalar_select %p250, %s22, 1
      %p252 = scmp.lt.s32.totalorder %s249, 7
      %s253 = scalar_select %p252, %s249, 7
      %s254 = smul.addr %s251, 24
      %s255 = sadd.s32 %s253, %s254
      %s256 = smul.addr %s255, 8
      %s257 = scalar_lea.vmem %s4, %s256
      %p258 = pneg %p176
      %p259 = pneg %p173
      %s260 = smul.u32 8, %s21
      %p261 = scmp.lt.s32.totalorder %s22, 1
      %s262 = scalar_select %p261, %s22, 1
      %p263 = scmp.lt.s32.totalorder %s260, 7
      %s264 = scalar_select %p263, %s260, 7
      %s265 = smul.addr %s262, 24
      %s266 = sadd.s32 %s264, %s265
      %s267 = smul.addr %s266, 8
      %s268 = scalar_lea.vmem %s5, %s267
      %p269 = scmp.lt.s32.totalorder %s22, 1
      %s270 = scalar_select %p269, %s22, 1
      %p271 = scmp.lt.s32.totalorder %s21, 0
      %s272 = scalar_select %p271, %s21, 0
      %s273 = sadd.s32 %s272, %s270
      %s274 = smul.addr %s273, 4
      %s275 = scalar_lea.vmem %s0, %s274
      %s276 = smul.u32 8, %s21
      %p277 = scmp.lt.s32.totalorder %s276, 7
      %s278 = scalar_select %p277, %s276, 7
      %s279 = smul.addr %s278, 8
      %s280 = scalar_lea.vmem %s3, %s279
      %s281 = smul.u32 8, %s21
      %s282 = smul.u32 8, %s21
      %p283 = scmp.lt.s32.totalorder %s22, 1
      %s284 = scalar_select %p283, %s22, 1
      %p285 = scmp.lt.s32.totalorder %s282, 7
      %s286 = scalar_select %p285, %s282, 7
      %s287 = smul.addr %s284, 24
      %s288 = sadd.s32 %s286, %s287
      %s289 = smul.addr %s288, 8
      %s290 = scalar_lea.vmem %s4, %s289
      %s291 = smul.u32 8, %s21
      %s292 = smul.u32 8, %s21
      %p293 = scmp.lt.s32.totalorder %s22, 1
      %s294 = scalar_select %p293, %s22, 1
      %p295 = scmp.lt.s32.totalorder %s292, 7
      %s296 = scalar_select %p295, %s292, 7
      %s297 = smul.addr %s294, 24
      %s298 = sadd.s32 %s296, %s297
      %s299 = smul.addr %s298, 8
      %s300 = scalar_lea.vmem %s5, %s299
      %s301 = smul.u32 8, %s21
      %v302 = vld [vmem:[%s275] sm:$0xf]
      %v303 = vld [vmem:[%s280] sm:$0xff]
      %v304 = vld [vmem:[%s280 + $0x8] sm:$0xff]
      %v305 = vld [vmem:[%s280 + $0x10] sm:$0xff]
      %v306 = vld [vmem:[%s280 + $0x18] sm:$0xff]
      %v307 = vld [vmem:[%s280 + $0x20] sm:$0xff]
      %v308 = vld [vmem:[%s280 + $0x28] sm:$0xff]
      %v309 = vld [vmem:[%s280 + $0x30] sm:$0xff]
      %v310 = vld [vmem:[%s280 + $0x38] sm:$0xff]
      %v311 = vld [vmem:[%s2] sm:$0xff]
      %v312 = vperm.slane %v311, 3
      %314 = vset.pattern.permute.xlu0 0
      %315 = vperm.xlu0 %314, %v303
      %v316 = vpop.permute.xlu0 %315
      %319 = vset.pattern.permute.xlu0 0
      %320 = vperm.xlu0 %319, %v304
      %v321 = vpop.permute.xlu0 %320
      %324 = vset.pattern.permute.xlu0 0
      %325 = vperm.xlu0 %324, %v305
      %v326 = vpop.permute.xlu0 %325
      %329 = vset.pattern.permute.xlu0 0
      %330 = vperm.xlu0 %329, %v306
      %v331 = vpop.permute.xlu0 %330
      %334 = vset.pattern.permute.xlu0 0
      %335 = vperm.xlu0 %334, %v307
      %v336 = vpop.permute.xlu0 %335
      %339 = vset.pattern.permute.xlu0 0
      %340 = vperm.xlu0 %339, %v308
      %v341 = vpop.permute.xlu0 %340
      %344 = vset.pattern.permute.xlu0 0
      %345 = vperm.xlu0 %344, %v309
      %v346 = vpop.permute.xlu0 %345
      %349 = vset.pattern.permute.xlu0 0
      %350 = vperm.xlu0 %349, %v310
      %v351 = vpop.permute.xlu0 %350
      %v353 = vmul.f32 %v312, %v316
      %v354 = vmul.f32 %v312, %v321
      %v355 = vmul.f32 %v312, %v326
      %v356 = vmul.f32 %v312, %v331
      %v357 = vmul.f32 %v312, %v336
      %v358 = vmul.f32 %v312, %v341
      %v359 = vmul.f32 %v312, %v346
      %v360 = vmul.f32 %v312, %v351
      %v361 = vperm.slane %v311, 4
      %362 = vset.pattern.permute.xlu0 1
      %363 = vperm.xlu0 %362, %v303
      %v364 = vpop.permute.xlu0 %363
      %366 = vset.pattern.permute.xlu0 1
      %367 = vperm.xlu0 %366, %v304
      %v368 = vpop.permute.xlu0 %367
      %370 = vset.pattern.permute.xlu0 1
      %371 = vperm.xlu0 %370, %v305
      %v372 = vpop.permute.xlu0 %371
      %374 = vset.pattern.permute.xlu0 1
      %375 = vperm.xlu0 %374, %v306
      %v376 = vpop.permute.xlu0 %375
      %378 = vset.pattern.permute.xlu0 1
      %379 = vperm.xlu0 %378, %v307
      %v380 = vpop.permute.xlu0 %379
      %382 = vset.pattern.permute.xlu0 1
      %383 = vperm.xlu0 %382, %v308
      %v384 = vpop.permute.xlu0 %383
      %386 = vset.pattern.permute.xlu0 1
      %387 = vperm.xlu0 %386, %v309
      %v388 = vpop.permute.xlu0 %387
      %390 = vset.pattern.permute.xlu0 1
      %391 = vperm.xlu0 %390, %v310
      %v392 = vpop.permute.xlu0 %391
      %v394 = vmul.f32 %v361, %v364
      %v395 = vmul.f32 %v361, %v368
      %v396 = vmul.f32 %v361, %v372
      %v397 = vmul.f32 %v361, %v376
      %v398 = vmul.f32 %v361, %v380
      %v399 = vmul.f32 %v361, %v384
      %v400 = vmul.f32 %v361, %v388
      %v401 = vmul.f32 %v361, %v392
      %v402 = vadd.f32 %v353, %v394
      %v403 = vadd.f32 %v354, %v395
      %v404 = vadd.f32 %v355, %v396
      %v405 = vadd.f32 %v356, %v397
      %v406 = vadd.f32 %v357, %v398
      %v407 = vadd.f32 %v358, %v399
      %v408 = vadd.f32 %v359, %v400
      %v409 = vadd.f32 %v360, %v401
      %v410 = vld [vmem:[%s1] sm:$0xf]
      %v411 = vperm.slane %v311, 0
      %412 = vxpose.xlu0.b32.start [1/16] %v302, 128
      %413 = vxpose.xlu0.b32.cont [2/16] 0.0, 128
      %414 = vxpose.xlu0.b32.cont [3/16] 0.0, 128
      %415 = vxpose.xlu0.b32.cont [4/16] 0.0, 128
      %416 = vxpose.xlu0.b32.cont [5/16] 0.0, 128
      %417 = vxpose.xlu0.b32.cont [6/16] 0.0, 128
      %418 = vxpose.xlu0.b32.cont [7/16] 0.0, 128
      %419 = vxpose.xlu0.b32.cont [8/16] 0.0, 128
      %420 = vxpose.xlu0.b32.cont [9/16] 0.0, 128
      %421 = vxpose.xlu0.b32.cont [10/16] 0.0, 128
      %422 = vxpose.xlu0.b32.cont [11/16] 0.0, 128
      %423 = vxpose.xlu0.b32.cont [12/16] 0.0, 128
      %424 = vxpose.xlu0.b32.cont [13/16] 0.0, 128
      %425 = vxpose.xlu0.b32.cont [14/16] 0.0, 128
      %426 = vxpose.xlu0.b32.cont [15/16] 0.0, 128
      %427 = vxpose.xlu0.b32.end [16/16] 0.0, 128
      %v428 = vpop.trf.xlu0
      %v429 = vpop.trf.xlu0
      %v430 = vpop.trf.xlu0
      %v431 = vpop.trf.xlu0
      %v432 = vpop.trf.xlu0
      %v433 = vpop.trf.xlu0
      %v434 = vpop.trf.xlu0
      %v435 = vpop.trf.xlu0
      %v436 = vpop.trf.xlu0
      %v437 = vpop.trf.xlu0
      %v438 = vpop.trf.xlu0
      %v439 = vpop.trf.xlu0
      %v440 = vpop.trf.xlu0
      %v441 = vpop.trf.xlu0
      %v442 = vpop.trf.xlu0
      %v443 = vpop.trf.xlu0
      %vm444 = vcmask 31744
      %v446 = vsel %vm444, %v428, 0
      %v449 = vsel %vm444, %v429, 0
      %v452 = vsel %vm444, %v430, 0
      %v455 = vsel %vm444, %v431, 0
      %v458 = vsel %vm444, %v432, 0
      %v461 = vsel %vm444, %v433, 0
      %v464 = vsel %vm444, %v434, 0
      %v467 = vsel %vm444, %v435, 0
      %vm469 = vcmask 1043456
      %v471 = vsel %vm469, %v410, 0
      %473 = vmatpush.msra.mxu0 0.0
      %474 = vmatpush.msra.mxu0 0.0
      %475 = vmatpush.msra.mxu0 0.0
      %476 = vmatpush.msra.mxu0 0.0
      %477 = vmatpush.msra.mxu0 0.0
      %478 = vmatpush.msra.mxu0 0.0
      %479 = vmatpush.msra.mxu0 0.0
      %480 = vmatpush.msra.mxu0 0.0
      %481 = vmatpush.msra.mxu0 0.0
      %482 = vmatpush.msra.mxu0 0.0
      %483 = vmatpush.msra.mxu0 0.0
      %484 = vmatpush.msra.mxu0 0.0
      %485 = vmatpush.msra.mxu0 0.0
      %486 = vmatpush.msra.mxu0 0.0
      %487 = vmatpush.msra.mxu0 0.0
      %488 = vmatpush.msra.mxu0 %v471
      %489 = vmatmul.f32.gmra.mxu0 %v446
      %v490 = vpop.f32.mrf.mxu0
      %v491 = vadd.f32 %v411, %v490
      %492 = vmatmul.f32.gmra.mxu0 %v449
      %v493 = vpop.f32.mrf.mxu0
      %v494 = vadd.f32 %v411, %v493
      %495 = vmatmul.f32.gmra.mxu0 %v452
      %v496 = vpop.f32.mrf.mxu0
      %v497 = vadd.f32 %v411, %v496
      %498 = vmatmul.f32.gmra.mxu0 %v455
      %v499 = vpop.f32.mrf.mxu0
      %v500 = vadd.f32 %v411, %v499
      %501 = vmatmul.f32.gmra.mxu0 %v458
      %v502 = vpop.f32.mrf.mxu0
      %v503 = vadd.f32 %v411, %v502
      %504 = vmatmul.f32.gmra.mxu0 %v461
      %v505 = vpop.f32.mrf.mxu0
      %v506 = vadd.f32 %v411, %v505
      %507 = vmatmul.f32.gmra.mxu0 %v464
      %v508 = vpop.f32.mrf.mxu0
      %v509 = vadd.f32 %v411, %v508
      %510 = vmatmul.f32.gmra.mxu0 %v467
      %v511 = vpop.f32.mrf.mxu0
      %v512 = vadd.f32 %v411, %v511
      %513 = vdwg.mxu0
      %vm514 = vcmask 64512
      %515 = vst.msk [vmem:[%s290] sm:$0xff] %vm514, %v491
      %516 = vst.msk [vmem:[%s290 + $0x8] sm:$0xff] %vm514, %v494
      %517 = vst.msk [vmem:[%s290 + $0x10] sm:$0xff] %vm514, %v497
      %518 = vst.msk [vmem:[%s290 + $0x18] sm:$0xff] %vm514, %v500
      %519 = vst.msk [vmem:[%s290 + $0x20] sm:$0xff] %vm514, %v503
      %520 = vst.msk [vmem:[%s290 + $0x28] sm:$0xff] %vm514, %v506
      %521 = vst.msk [vmem:[%s290 + $0x30] sm:$0xff] %vm514, %v509
      %522 = vst.msk [vmem:[%s290 + $0x38] sm:$0xff] %vm514, %v512
      %v523 = vmax.f32 %v491, -60.0
      %v524 = vmax.f32 %v494, -60.0
      %v525 = vmax.f32 %v497, -60.0
      %v526 = vmax.f32 %v500, -60.0
      %v527 = vmax.f32 %v503, -60.0
      %v528 = vmax.f32 %v506, -60.0
      %v529 = vmax.f32 %v509, -60.0
      %v530 = vmax.f32 %v512, -60.0
      %v531 = vsub.f32 0.0, %v523
      %v532 = vsub.f32 0.0, %v524
      %v533 = vsub.f32 0.0, %v525
      %v534 = vsub.f32 0.0, %v526
      %v535 = vsub.f32 0.0, %v527
      %v536 = vsub.f32 0.0, %v528
      %v537 = vsub.f32 0.0, %v529
      %v538 = vsub.f32 0.0, %v530
      %v539 = vmul.f32 %v531, 1.442695
      %v540 = vpow.pop %v539
      %v541 = vmul.f32 %v532, 1.442695
      %v542 = vpow.pop %v541
      %v543 = vmul.f32 %v533, 1.442695
      %v544 = vpow.pop %v543
      %v545 = vmul.f32 %v534, 1.442695
      %v546 = vpow.pop %v545
      %v547 = vmul.f32 %v535, 1.442695
      %v548 = vpow.pop %v547
      %v549 = vmul.f32 %v536, 1.442695
      %v550 = vpow.pop %v549
      %v551 = vmul.f32 %v537, 1.442695
      %v552 = vpow.pop %v551
      %v553 = vmul.f32 %v538, 1.442695
      %v554 = vpow.pop %v553
      %v555 = vadd.f32 %v540, 1.0
      %v556 = vadd.f32 %v542, 1.0
      %v557 = vadd.f32 %v544, 1.0
      %v558 = vadd.f32 %v546, 1.0
      %v559 = vadd.f32 %v548, 1.0
      %v560 = vadd.f32 %v550, 1.0
      %v561 = vadd.f32 %v552, 1.0
      %v562 = vadd.f32 %v554, 1.0
      %v563 = vrcp.pop %v555
      %v564 = vrcp.pop %v556
      %v565 = vrcp.pop %v557
      %v566 = vrcp.pop %v558
      %v567 = vrcp.pop %v559
      %v568 = vrcp.pop %v560
      %v569 = vrcp.pop %v561
      %v570 = vrcp.pop %v562
      %v571 = vmul.f32 %v555, %v563
      %v572 = vmul.f32 %v556, %v564
      %v573 = vmul.f32 %v557, %v565
      %v574 = vmul.f32 %v558, %v566
      %v575 = vmul.f32 %v559, %v567
      %v576 = vmul.f32 %v560, %v568
      %v577 = vmul.f32 %v561, %v569
      %v578 = vmul.f32 %v562, %v570
      %v579 = vsub.f32 2.0, %v571
      %v580 = vsub.f32 2.0, %v572
      %v581 = vsub.f32 2.0, %v573
      %v582 = vsub.f32 2.0, %v574
      %v583 = vsub.f32 2.0, %v575
      %v584 = vsub.f32 2.0, %v576
      %v585 = vsub.f32 2.0, %v577
      %v586 = vsub.f32 2.0, %v578
      %v587 = vmul.f32 %v563, %v579
      %v588 = vmul.f32 %v564, %v580
      %v589 = vmul.f32 %v565, %v581
      %v590 = vmul.f32 %v566, %v582
      %v591 = vmul.f32 %v567, %v583
      %v592 = vmul.f32 %v568, %v584
      %v593 = vmul.f32 %v569, %v585
      %v594 = vmul.f32 %v570, %v586
      %v595 = vperm.slane %v311, 1
      %v596 = vmul.f32 %v595, %v587
      %v597 = vmul.f32 %v595, %v588
      %v598 = vmul.f32 %v595, %v589
      %v599 = vmul.f32 %v595, %v590
      %v600 = vmul.f32 %v595, %v591
      %v601 = vmul.f32 %v595, %v592
      %v602 = vmul.f32 %v595, %v593
      %v603 = vmul.f32 %v595, %v594
      %v604 = vperm.slane %v311, 2
      %v605 = vadd.f32 %v596, %v604
      %v606 = vadd.f32 %v597, %v604
      %v607 = vadd.f32 %v598, %v604
      %v608 = vadd.f32 %v599, %v604
      %v609 = vadd.f32 %v600, %v604
      %v610 = vadd.f32 %v601, %v604
      %v611 = vadd.f32 %v602, %v604
      %v612 = vadd.f32 %v603, %v604
      %v613 = vmul.f32 %v587, %v605
      %v614 = vmul.f32 %v588, %v606
      %v615 = vmul.f32 %v589, %v607
      %v616 = vmul.f32 %v590, %v608
      %v617 = vmul.f32 %v591, %v609
      %v618 = vmul.f32 %v592, %v610
      %v619 = vmul.f32 %v593, %v611
      %v620 = vmul.f32 %v594, %v612
      %v621 = vadd.f32 %v613, %v402
      %v622 = vadd.f32 %v614, %v403
      %v623 = vadd.f32 %v615, %v404
      %v624 = vadd.f32 %v616, %v405
      %v625 = vadd.f32 %v617, %v406
      %v626 = vadd.f32 %v618, %v407
      %v627 = vadd.f32 %v619, %v408
      %v628 = vadd.f32 %v620, %v409
      %629 = vst.msk [vmem:[%s300] sm:$0xff] %vm514, %v621
      %630 = vst.msk [vmem:[%s300 + $0x8] sm:$0xff] %vm514, %v622
      %631 = vst.msk [vmem:[%s300 + $0x10] sm:$0xff] %vm514, %v623
      %632 = vst.msk [vmem:[%s300 + $0x18] sm:$0xff] %vm514, %v624
      %633 = vst.msk [vmem:[%s300 + $0x20] sm:$0xff] %vm514, %v625
      %634 = vst.msk [vmem:[%s300 + $0x28] sm:$0xff] %vm514, %v626
      %635 = vst.msk [vmem:[%s300 + $0x30] sm:$0xff] %vm514, %v627
      %636 = vst.msk [vmem:[%s300 + $0x38] sm:$0xff] %vm514, %v628
      %s637 = scalar_lea.vmem %s2, 8
      %v638 = vld [vmem:[%s637] sm:$0xff]
      %s639 = scalar_lea.vmem %s1, 4
      %v640 = vld [vmem:[%s639] sm:$0xf]
      %v641 = vperm.slane %v638, 0
      %v643 = vsel %vm469, %v640, 0
      %645 = vmatpush.msra.mxu0 0.0
      %646 = vmatpush.msra.mxu0 0.0
      %647 = vmatpush.msra.mxu0 0.0
      %648 = vmatpush.msra.mxu0 0.0
      %649 = vmatpush.msra.mxu0 0.0
      %650 = vmatpush.msra.mxu0 0.0
      %651 = vmatpush.msra.mxu0 0.0
      %652 = vmatpush.msra.mxu0 0.0
      %653 = vmatpush.msra.mxu0 0.0
      %654 = vmatpush.msra.mxu0 0.0
      %655 = vmatpush.msra.mxu0 0.0
      %656 = vmatpush.msra.mxu0 0.0
      %657 = vmatpush.msra.mxu0 0.0
      %658 = vmatpush.msra.mxu0 0.0
      %659 = vmatpush.msra.mxu0 0.0
      %660 = vmatpush.msra.mxu0 %v643
      %661 = vmatmul.f32.gmra.mxu0 %v446
      %v662 = vpop.f32.mrf.mxu0
      %v663 = vadd.f32 %v641, %v662
      %664 = vmatmul.f32.gmra.mxu0 %v449
      %v665 = vpop.f32.mrf.mxu0
      %v666 = vadd.f32 %v641, %v665
      %667 = vmatmul.f32.gmra.mxu0 %v452
      %v668 = vpop.f32.mrf.mxu0
      %v669 = vadd.f32 %v641, %v668
      %670 = vmatmul.f32.gmra.mxu0 %v455
      %v671 = vpop.f32.mrf.mxu0
      %v672 = vadd.f32 %v641, %v671
      %673 = vmatmul.f32.gmra.mxu0 %v458
      %v674 = vpop.f32.mrf.mxu0
      %v675 = vadd.f32 %v641, %v674
      %676 = vmatmul.f32.gmra.mxu0 %v461
      %v677 = vpop.f32.mrf.mxu0
      %v678 = vadd.f32 %v641, %v677
      %679 = vmatmul.f32.gmra.mxu0 %v464
      %v680 = vpop.f32.mrf.mxu0
      %v681 = vadd.f32 %v641, %v680
      %682 = vmatmul.f32.gmra.mxu0 %v467
      %v683 = vpop.f32.mrf.mxu0
      %v684 = vadd.f32 %v641, %v683
      %685 = vdwg.mxu0
      %s686 = scalar_lea.vmem %s290, 64
      %687 = vst.msk [vmem:[%s686] sm:$0xff] %vm514, %v663
      %688 = vst.msk [vmem:[%s686 + $0x8] sm:$0xff] %vm514, %v666
      %689 = vst.msk [vmem:[%s686 + $0x10] sm:$0xff] %vm514, %v669
      %690 = vst.msk [vmem:[%s686 + $0x18] sm:$0xff] %vm514, %v672
      %691 = vst.msk [vmem:[%s686 + $0x20] sm:$0xff] %vm514, %v675
      %692 = vst.msk [vmem:[%s686 + $0x28] sm:$0xff] %vm514, %v678
      %693 = vst.msk [vmem:[%s686 + $0x30] sm:$0xff] %vm514, %v681
      %694 = vst.msk [vmem:[%s686 + $0x38] sm:$0xff] %vm514, %v684
      %v695 = vmax.f32 %v663, -60.0
      %v696 = vmax.f32 %v666, -60.0
      %v697 = vmax.f32 %v669, -60.0
      %v698 = vmax.f32 %v672, -60.0
      %v699 = vmax.f32 %v675, -60.0
      %v700 = vmax.f32 %v678, -60.0
      %v701 = vmax.f32 %v681, -60.0
      %v702 = vmax.f32 %v684, -60.0
      %v703 = vsub.f32 0.0, %v695
      %v704 = vsub.f32 0.0, %v696
      %v705 = vsub.f32 0.0, %v697
      %v706 = vsub.f32 0.0, %v698
      %v707 = vsub.f32 0.0, %v699
      %v708 = vsub.f32 0.0, %v700
      %v709 = vsub.f32 0.0, %v701
      %v710 = vsub.f32 0.0, %v702
      %v711 = vmul.f32 %v703, 1.442695
      %v712 = vpow.pop %v711
      %v713 = vmul.f32 %v704, 1.442695
      %v714 = vpow.pop %v713
      %v715 = vmul.f32 %v705, 1.442695
      %v716 = vpow.pop %v715
      %v717 = vmul.f32 %v706, 1.442695
      %v718 = vpow.pop %v717
      %v719 = vmul.f32 %v707, 1.442695
      %v720 = vpow.pop %v719
      %v721 = vmul.f32 %v708, 1.442695
      %v722 = vpow.pop %v721
      %v723 = vmul.f32 %v709, 1.442695
      %v724 = vpow.pop %v723
      %v725 = vmul.f32 %v710, 1.442695
      %v726 = vpow.pop %v725
      %v727 = vadd.f32 %v712, 1.0
      %v728 = vadd.f32 %v714, 1.0
      %v729 = vadd.f32 %v716, 1.0
      %v730 = vadd.f32 %v718, 1.0
      %v731 = vadd.f32 %v720, 1.0
      %v732 = vadd.f32 %v722, 1.0
      %v733 = vadd.f32 %v724, 1.0
      %v734 = vadd.f32 %v726, 1.0
      %v735 = vrcp.pop %v727
      %v736 = vrcp.pop %v728
      %v737 = vrcp.pop %v729
      %v738 = vrcp.pop %v730
      %v739 = vrcp.pop %v731
      %v740 = vrcp.pop %v732
      %v741 = vrcp.pop %v733
      %v742 = vrcp.pop %v734
      %v743 = vmul.f32 %v727, %v735
      %v744 = vmul.f32 %v728, %v736
      %v745 = vmul.f32 %v729, %v737
      %v746 = vmul.f32 %v730, %v738
      %v747 = vmul.f32 %v731, %v739
      %v748 = vmul.f32 %v732, %v740
      %v749 = vmul.f32 %v733, %v741
      %v750 = vmul.f32 %v734, %v742
      %v751 = vsub.f32 2.0, %v743
      %v752 = vsub.f32 2.0, %v744
      %v753 = vsub.f32 2.0, %v745
      %v754 = vsub.f32 2.0, %v746
      %v755 = vsub.f32 2.0, %v747
      %v756 = vsub.f32 2.0, %v748
      %v757 = vsub.f32 2.0, %v749
      %v758 = vsub.f32 2.0, %v750
      %v759 = vmul.f32 %v735, %v751
      %v760 = vmul.f32 %v736, %v752
      %v761 = vmul.f32 %v737, %v753
      %v762 = vmul.f32 %v738, %v754
      %v763 = vmul.f32 %v739, %v755
      %v764 = vmul.f32 %v740, %v756
      %v765 = vmul.f32 %v741, %v757
      %v766 = vmul.f32 %v742, %v758
      %v767 = vperm.slane %v638, 1
      %v768 = vmul.f32 %v767, %v759
      %v769 = vmul.f32 %v767, %v760
      %v770 = vmul.f32 %v767, %v761
      %v771 = vmul.f32 %v767, %v762
      %v772 = vmul.f32 %v767, %v763
      %v773 = vmul.f32 %v767, %v764
      %v774 = vmul.f32 %v767, %v765
      %v775 = vmul.f32 %v767, %v766
      %v776 = vadd.f32 %v768, %v604
      %v777 = vadd.f32 %v769, %v604
      %v778 = vadd.f32 %v770, %v604
      %v779 = vadd.f32 %v771, %v604
      %v780 = vadd.f32 %v772, %v604
      %v781 = vadd.f32 %v773, %v604
      %v782 = vadd.f32 %v774, %v604
      %v783 = vadd.f32 %v775, %v604
      %v784 = vmul.f32 %v759, %v776
      %v785 = vmul.f32 %v760, %v777
      %v786 = vmul.f32 %v761, %v778
      %v787 = vmul.f32 %v762, %v779
      %v788 = vmul.f32 %v763, %v780
      %v789 = vmul.f32 %v764, %v781
      %v790 = vmul.f32 %v765, %v782
      %v791 = vmul.f32 %v766, %v783
      %v792 = vadd.f32 %v784, %v402
      %v793 = vadd.f32 %v785, %v403
      %v794 = vadd.f32 %v786, %v404
      %v795 = vadd.f32 %v787, %v405
      %v796 = vadd.f32 %v788, %v406
      %v797 = vadd.f32 %v789, %v407
      %v798 = vadd.f32 %v790, %v408
      %v799 = vadd.f32 %v791, %v409
      %s800 = scalar_lea.vmem %s300, 64
      %801 = vst.msk [vmem:[%s800] sm:$0xff] %vm514, %v792
      %802 = vst.msk [vmem:[%s800 + $0x8] sm:$0xff] %vm514, %v793
      %803 = vst.msk [vmem:[%s800 + $0x10] sm:$0xff] %vm514, %v794
      %804 = vst.msk [vmem:[%s800 + $0x18] sm:$0xff] %vm514, %v795
      %805 = vst.msk [vmem:[%s800 + $0x20] sm:$0xff] %vm514, %v796
      %806 = vst.msk [vmem:[%s800 + $0x28] sm:$0xff] %vm514, %v797
      %807 = vst.msk [vmem:[%s800 + $0x30] sm:$0xff] %vm514, %v798
      %808 = vst.msk [vmem:[%s800 + $0x38] sm:$0xff] %vm514, %v799
      %s809 = scalar_lea.vmem %s2, 16
      %v810 = vld [vmem:[%s809] sm:$0xff]
      %s811 = scalar_lea.vmem %s1, 8
      %v812 = vld [vmem:[%s811] sm:$0xf]
      %v813 = vperm.slane %v810, 0
      %v815 = vsel %vm469, %v812, 0
      %817 = vmatpush.msra.mxu0 0.0
      %818 = vmatpush.msra.mxu0 0.0
      %819 = vmatpush.msra.mxu0 0.0
      %820 = vmatpush.msra.mxu0 0.0
      %821 = vmatpush.msra.mxu0 0.0
      %822 = vmatpush.msra.mxu0 0.0
      %823 = vmatpush.msra.mxu0 0.0
      %824 = vmatpush.msra.mxu0 0.0
      %825 = vmatpush.msra.mxu0 0.0
      %826 = vmatpush.msra.mxu0 0.0
      %827 = vmatpush.msra.mxu0 0.0
      %828 = vmatpush.msra.mxu0 0.0
      %829 = vmatpush.msra.mxu0 0.0
      %830 = vmatpush.msra.mxu0 0.0
      %831 = vmatpush.msra.mxu0 0.0
      %832 = vmatpush.msra.mxu0 %v815
      %833 = vmatmul.f32.gmra.mxu0 %v446
      %v834 = vpop.f32.mrf.mxu0
      %v835 = vadd.f32 %v813, %v834
      %836 = vmatmul.f32.gmra.mxu0 %v449
      %v837 = vpop.f32.mrf.mxu0
      %v838 = vadd.f32 %v813, %v837
      %839 = vmatmul.f32.gmra.mxu0 %v452
      %v840 = vpop.f32.mrf.mxu0
      %v841 = vadd.f32 %v813, %v840
      %842 = vmatmul.f32.gmra.mxu0 %v455
      %v843 = vpop.f32.mrf.mxu0
      %v844 = vadd.f32 %v813, %v843
      %845 = vmatmul.f32.gmra.mxu0 %v458
      %v846 = vpop.f32.mrf.mxu0
      %v847 = vadd.f32 %v813, %v846
      %848 = vmatmul.f32.gmra.mxu0 %v461
      %v849 = vpop.f32.mrf.mxu0
      %v850 = vadd.f32 %v813, %v849
      %851 = vmatmul.f32.gmra.mxu0 %v464
      %v852 = vpop.f32.mrf.mxu0
      %v853 = vadd.f32 %v813, %v852
      %854 = vmatmul.f32.gmra.mxu0 %v467
      %v855 = vpop.f32.mrf.mxu0
      %v856 = vadd.f32 %v813, %v855
      %857 = vdwg.mxu0
      %s858 = scalar_lea.vmem %s290, 128
      %859 = vst.msk [vmem:[%s858] sm:$0xff] %vm514, %v835
      %860 = vst.msk [vmem:[%s858 + $0x8] sm:$0xff] %vm514, %v838
      %861 = vst.msk [vmem:[%s858 + $0x10] sm:$0xff] %vm514, %v841
      %862 = vst.msk [vmem:[%s858 + $0x18] sm:$0xff] %vm514, %v844
      %863 = vst.msk [vmem:[%s858 + $0x20] sm:$0xff] %vm514, %v847
      %864 = vst.msk [vmem:[%s858 + $0x28] sm:$0xff] %vm514, %v850
      %865 = vst.msk [vmem:[%s858 + $0x30] sm:$0xff] %vm514, %v853
      %866 = vst.msk [vmem:[%s858 + $0x38] sm:$0xff] %vm514, %v856
      %v867 = vmax.f32 %v835, -60.0
      %v868 = vmax.f32 %v838, -60.0
      %v869 = vmax.f32 %v841, -60.0
      %v870 = vmax.f32 %v844, -60.0
      %v871 = vmax.f32 %v847, -60.0
      %v872 = vmax.f32 %v850, -60.0
      %v873 = vmax.f32 %v853, -60.0
      %v874 = vmax.f32 %v856, -60.0
      %v875 = vsub.f32 0.0, %v867
      %v876 = vsub.f32 0.0, %v868
      %v877 = vsub.f32 0.0, %v869
      %v878 = vsub.f32 0.0, %v870
      %v879 = vsub.f32 0.0, %v871
      %v880 = vsub.f32 0.0, %v872
      %v881 = vsub.f32 0.0, %v873
      %v882 = vsub.f32 0.0, %v874
      %v883 = vmul.f32 %v875, 1.442695
      %v884 = vpow.pop %v883
      %v885 = vmul.f32 %v876, 1.442695
      %v886 = vpow.pop %v885
      %v887 = vmul.f32 %v877, 1.442695
      %v888 = vpow.pop %v887
      %v889 = vmul.f32 %v878, 1.442695
      %v890 = vpow.pop %v889
      %v891 = vmul.f32 %v879, 1.442695
      %v892 = vpow.pop %v891
      %v893 = vmul.f32 %v880, 1.442695
      %v894 = vpow.pop %v893
      %v895 = vmul.f32 %v881, 1.442695
      %v896 = vpow.pop %v895
      %v897 = vmul.f32 %v882, 1.442695
      %v898 = vpow.pop %v897
      %v899 = vadd.f32 %v884, 1.0
      %v900 = vadd.f32 %v886, 1.0
      %v901 = vadd.f32 %v888, 1.0
      %v902 = vadd.f32 %v890, 1.0
      %v903 = vadd.f32 %v892, 1.0
      %v904 = vadd.f32 %v894, 1.0
      %v905 = vadd.f32 %v896, 1.0
      %v906 = vadd.f32 %v898, 1.0
      %v907 = vrcp.pop %v899
      %v908 = vrcp.pop %v900
      %v909 = vrcp.pop %v901
      %v910 = vrcp.pop %v902
      %v911 = vrcp.pop %v903
      %v912 = vrcp.pop %v904
      %v913 = vrcp.pop %v905
      %v914 = vrcp.pop %v906
      %v915 = vmul.f32 %v899, %v907
      %v916 = vmul.f32 %v900, %v908
      %v917 = vmul.f32 %v901, %v909
      %v918 = vmul.f32 %v902, %v910
      %v919 = vmul.f32 %v903, %v911
      %v920 = vmul.f32 %v904, %v912
      %v921 = vmul.f32 %v905, %v913
      %v922 = vmul.f32 %v906, %v914
      %v923 = vsub.f32 2.0, %v915
      %v924 = vsub.f32 2.0, %v916
      %v925 = vsub.f32 2.0, %v917
      %v926 = vsub.f32 2.0, %v918
      %v927 = vsub.f32 2.0, %v919
      %v928 = vsub.f32 2.0, %v920
      %v929 = vsub.f32 2.0, %v921
      %v930 = vsub.f32 2.0, %v922
      %v931 = vmul.f32 %v907, %v923
      %v932 = vmul.f32 %v908, %v924
      %v933 = vmul.f32 %v909, %v925
      %v934 = vmul.f32 %v910, %v926
      %v935 = vmul.f32 %v911, %v927
      %v936 = vmul.f32 %v912, %v928
      %v937 = vmul.f32 %v913, %v929
      %v938 = vmul.f32 %v914, %v930
      %v939 = vperm.slane %v810, 1
      %v940 = vmul.f32 %v939, %v931
      %v941 = vmul.f32 %v939, %v932
      %v942 = vmul.f32 %v939, %v933
      %v943 = vmul.f32 %v939, %v934
      %v944 = vmul.f32 %v939, %v935
      %v945 = vmul.f32 %v939, %v936
      %v946 = vmul.f32 %v939, %v937
      %v947 = vmul.f32 %v939, %v938
      %v948 = vadd.f32 %v940, %v604
      %v949 = vadd.f32 %v941, %v604
      %v950 = vadd.f32 %v942, %v604
      %v951 = vadd.f32 %v943, %v604
      %v952 = vadd.f32 %v944, %v604
      %v953 = vadd.f32 %v945, %v604
      %v954 = vadd.f32 %v946, %v604
      %v955 = vadd.f32 %v947, %v604
      %v956 = vmul.f32 %v931, %v948
      %v957 = vmul.f32 %v932, %v949
      %v958 = vmul.f32 %v933, %v950
      %v959 = vmul.f32 %v934, %v951
      %v960 = vmul.f32 %v935, %v952
      %v961 = vmul.f32 %v936, %v953
      %v962 = vmul.f32 %v937, %v954
      %v963 = vmul.f32 %v938, %v955
      %v964 = vadd.f32 %v956, %v402
      %v965 = vadd.f32 %v957, %v403
      %v966 = vadd.f32 %v958, %v404
      %v967 = vadd.f32 %v959, %v405
      %v968 = vadd.f32 %v960, %v406
      %v969 = vadd.f32 %v961, %v407
      %v970 = vadd.f32 %v962, %v408
      %v971 = vadd.f32 %v963, %v409
      %s972 = scalar_lea.vmem %s300, 128
      %973 = vst.msk [vmem:[%s972] sm:$0xff] %vm514, %v964
      %974 = vst.msk [vmem:[%s972 + $0x8] sm:$0xff] %vm514, %v965
      %975 = vst.msk [vmem:[%s972 + $0x10] sm:$0xff] %vm514, %v966
      %976 = vst.msk [vmem:[%s972 + $0x18] sm:$0xff] %vm514, %v967
      %977 = vst.msk [vmem:[%s972 + $0x20] sm:$0xff] %vm514, %v968
      %978 = vst.msk [vmem:[%s972 + $0x28] sm:$0xff] %vm514, %v969
      %979 = vst.msk [vmem:[%s972 + $0x30] sm:$0xff] %vm514, %v970
      %980 = vst.msk [vmem:[%s972 + $0x38] sm:$0xff] %vm514, %v971
      %s981 = smul.u32 8, %s21
      %p982 = scmp.lt.s32.totalorder %s22, 1
      %s983 = scalar_select %p982, %s22, 1
      %p984 = scmp.lt.s32.totalorder %s981, 7
      %s985 = scalar_select %p984, %s981, 7
      %s986 = smul.addr %s983, 24
      %s987 = sadd.s32 %s985, %s986
      %s988 = smul.addr %s987, 8
      %s989 = scalar_lea.vmem %s4, %s988
      %s990 = smul.u32 8, %s21
      %p991 = scmp.lt.s32.totalorder %s22, 1
      %s992 = scalar_select %p991, %s22, 1
      %p993 = scmp.lt.s32.totalorder %s990, 7
      %s994 = scalar_select %p993, %s990, 7
      %s995 = smul.addr %s992, 24
      %s996 = sadd.s32 %s994, %s995
      %s997 = smul.addr %s996, 8
      %s998 = scalar_lea.vmem %s5, %s997
      // Predicated region
      $region37: #{tpu_custom_call.1} parent=35 // pred_check
        %p999 = pneg %p145
      $region38: #{tpu_custom_call.1} parent=35 // pred_check_branch
        %1001 = sbr.rel (%p999) target = $region40
      $region39: #{tpu_custom_call.1} parent=35 // pred_region
        %s1002 = smul.u32 8, %s21
      $region40: #{tpu_custom_call.1} parent=35 // pred_fallthru
        _
      // Predicated region
      $region41: #{tpu_custom_call.1} parent=35 // pred_check
        %p1003 = pneg %p173
      $region42: #{tpu_custom_call.1} parent=35 // pred_check_branch
        %1005 = sbr.rel (%p1003) target = $region44
      $region43: #{tpu_custom_call.1} parent=35 // pred_region
        %s1006 = smul.u32 8, %s21
      $region44: #{tpu_custom_call.1} parent=35 // pred_fallthru
        _
    $region36: #{tpu_custom_call.1} parent=5 // pred_fallthru
      _
    %p1007 = scmp.le.s32.totalorder 2, %s12
    // Predicated region
    $region45: #{tpu_custom_call.1} parent=5 // pred_check
      %p1008 = pneg %p1007
    $region46: #{tpu_custom_call.1} parent=5 // pred_check_branch
      %1010 = sbr.rel (%p1008) target = $region48
    $region47: #{tpu_custom_call.1} parent=5 // pred_region
      %s1011 = ssub.s32 %s12, 2
      // Predicated region
      $region49: #{tpu_custom_call.1} parent=47 // pred_check
        %p1012 = pneg %p151
      $region50: #{tpu_custom_call.1} parent=47 // pred_check_branch
        %1014 = sbr.rel (%p1012) target = $region52
      $region51: #{tpu_custom_call.1} parent=47 // pred_region
        %s1015 = smul.u32 8, %s23
        %p1016 = scmp.lt.s32.totalorder %s24, 1
        %s1017 = scalar_select %p1016, %s24, 1
        %p1018 = scmp.lt.s32.totalorder %s1015, 7
        %s1019 = scalar_select %p1018, %s1015, 7
        %s1020 = smul.addr %s1017, 24
        %s1021 = sadd.s32 %s1019, %s1020
        %s1022 = smul.addr %s1021, 8
        %s1023 = scalar_lea.vmem %s4, %s1022
      $region52: #{tpu_custom_call.1} parent=47 // pred_fallthru
        _
      // Predicated region
      $region53: #{tpu_custom_call.1} parent=47 // pred_check
        %p1024 = pneg %p179
      $region54: #{tpu_custom_call.1} parent=47 // pred_check_branch
        %1026 = sbr.rel (%p1024) target = $region56
      $region55: #{tpu_custom_call.1} parent=47 // pred_region
        %s1027 = smul.u32 8, %s23
        %p1028 = scmp.lt.s32.totalorder %s24, 1
        %s1029 = scalar_select %p1028, %s24, 1
        %p1030 = scmp.lt.s32.totalorder %s1027, 7
        %s1031 = scalar_select %p1030, %s1027, 7
        %s1032 = smul.addr %s1029, 24
        %s1033 = sadd.s32 %s1031, %s1032
        %s1034 = smul.addr %s1033, 8
        %s1035 = scalar_lea.vmem %s5, %s1034
      $region56: #{tpu_custom_call.1} parent=47 // pred_fallthru
        _
    $region48: #{tpu_custom_call.1} parent=5 // pred_fallthru
      _
  $region6: #{tpu_custom_call.1} parent=0 // loop_footer
    %s16 = sadd.s32 1, %s12
  $region7: #{tpu_custom_call.1} parent=0 // loop_footer_branch
    %11 = sbr.rel target = $region3
  $region8: #{tpu_custom_call.1} parent=0 // loop_exit
    _

</llo_original>
